<compile_context>
chip_gen: v6e
topology: v6e:2x2x1
jax: 0.10.0
libtpu: 0.0.40
codegen_flags: <defaults>
</compile_context>

<pallas_src>
import jax
import jax.numpy as jnp
import numpy as np
from jax.experimental import pallas as pl
from jax.experimental.pallas import tpu as pltpu

_EPS = 1e-5  # torch.nn.GroupNorm default


# --------------------------------- kernel ----------------------------------

def _patch_merging_kernel(x_ref, a_ref, aux_ref, sel_ref, o_ref, quad_ref):
    """One grid step: `bt` samples.  x block (bt, C, Hh, 2W) -> out block (bt, 2C, Hh*Wh)."""
    bt, C, Hh, W2 = x_ref.shape            # W2 == 2*W
    Wh = W2 // 4
    npix = Hh * Wh
    inv_n = 1.0 / float(C * Hh * W2)       # GroupNorm(1, 4C) group size == C*H*W

    A = a_ref[...]                         # (2C, 4C) bf16, gamma folded in
    sel = sel_ref[...]                     # (2W, 4*Wh) bf16, 0/1 parity selector
    arow = aux_ref[:, 0:1]                 # (2C, 1) f32, rowsum(A)
    bvec = aux_ref[:, 1:2]                 # (2C, 1) f32, w_red @ beta

    for b in range(bt):                    # bt <= 2 by default: bounded live ranges
        xr = x_ref[b].astype(jnp.float32)  # (C, Hh, 2W); lane row h = [row 2h | row 2h+1]

        # GroupNorm(1, 4C) statistics: merge is a bijection, so stats over the raw sample
        # equal stats over the merged tensor.  Two-pass form in f32 for robustness.
        mean = jnp.sum(xr) * inv_n
        var = jnp.sum(jnp.square(xr - mean)) * inv_n
        rstd = jax.lax.rsqrt(var + _EPS)

        # Row + column parity split in a single MXU pass; output column blocks are
        # [x0 | x1 | x2 | x3] = [even/even | odd/even | even/odd | odd/odd].
        u = jnp.dot(xr.reshape(C * Hh, W2).astype(jnp.bfloat16), sel,
                    preferred_element_type=jnp.float32)            # (C*Hh, 4*Wh)
        u3 = u.reshape(C, Hh, 4 * Wh)

        # Pack quadrants in PyTorch cat([x0,x1,x2,x3], 1) channel order into (4C, npix)
        # bf16 scratch (values are exact permutations of bf16-rounded activations).
        for t in range(4):
            quad_ref[t * C:(t + 1) * C, :] = (
                u3[:, :, t * Wh:(t + 1) * Wh].reshape(C, npix).astype(jnp.bfloat16))

        # Norm-folded 1x1 reduction in one K=4C matmul:
        #   y = rstd * (A @ x_merged) + (w_red @ beta - mean * rstd * rowsum(A))
        y = jnp.dot(A, quad_ref[...], preferred_element_type=jnp.float32)  # (2C, npix)
        y = y * rstd + (bvec - (mean * rstd) * arow)
        o_ref[b] = y.astype(o_ref.dtype)


# --------------------------------- wrapper ---------------------------------

def _pick_batch_tile(B, max_tile=2):
    """Small batch tile (<=2) that divides B; keep >=2 grid steps when possible so a
    two-TensorCore part (v7x) can split the 'parallel' batch axis."""
    bt = max(1, min(B, max_tile))
    if B >= 2:
        bt = min(bt, max(1, B // 2))
    while B % bt:
        bt -= 1
    return bt


def patch_merging_forward(x, w_red, gamma, beta, *, batch_tile=None):
    """PatchMerging forward: x (B, C, H, W) NCHW -> (B, 2C, H//2, W//2) NCHW."""
    B, C, H, W = x.shape
    assert H % 2 == 0 and W % 2 == 0, f"x size ({H}*{W}) are not even."
    Hh, Wh = H // 2, W // 2
    npix = Hh * Wh
    Cout = w_red.shape[0]
    assert w_red.shape == (2 * C, 4 * C)
    assert gamma.shape == (4 * C,) and beta.shape == (4 * C,)

    # Fold the GroupNorm affine into the 1x1-conv weight (tiny wrapper-side ops):
    #   w @ (gamma*(x-mean)*rstd + beta) = rstd*(A@x) + (w@beta - mean*rstd*rowsum(A))
    A32 = w_red.astype(jnp.float32) * gamma.astype(jnp.float32)[None, :]   # (2C, 4C)
    A = A32.astype(jnp.bfloat16)                                           # MXU operand
    aux = jnp.stack(
        [jnp.sum(A32, axis=1),
         w_red.astype(jnp.float32) @ beta.astype(jnp.float32)], axis=1)    # (2C, 2) f32

    # 0/1 selector: (row-pair-merged rows) @ sel = [x0 | x1 | x2 | x3] column blocks.
    j = np.arange(Wh)
    src = np.concatenate([2 * j, W + 2 * j, 2 * j + 1, W + 2 * j + 1])
    sel = jnp.asarray((np.arange(2 * W)[:, None] == src[None, :])
                      .astype(np.float32)).astype(jnp.bfloat16)            # (2W, 4*Wh)

    # Free contiguous reshape: new lane row h = [x row 2h | x row 2h+1].
    x2 = x.reshape(B, C, Hh, 2 * W)

    if batch_tile is None:
        # bt<=2 is safe on every generation; on single-TC 128-MiB parts (v5e/v6e) pass
        # batch_tile=4 to further amortize the ~0.35us per-grid-step overhead.
        bt = _pick_batch_tile(B)
    else:
        bt = batch_tile
        assert B % bt == 0

    out_flat = pl.pallas_call(
        _patch_merging_kernel,
        out_shape=jax.ShapeDtypeStruct((B, Cout, npix), x.dtype),
        grid_spec=pltpu.PrefetchScalarGridSpec(
            num_scalar_prefetch=0,
            grid=(B // bt,),
            in_specs=[
                pl.BlockSpec((bt, C, Hh, 2 * W), lambda i: (i, 0, 0, 0)),  # x (row-pair merged)
                pl.BlockSpec((Cout, 4 * C), lambda i: (0, 0)),             # folded weight (bf16)
                pl.BlockSpec((Cout, 2), lambda i: (0, 0)),                 # [rowsum(A) | w@beta]
                pl.BlockSpec((2 * W, 4 * Wh), lambda i: (0, 0)),           # parity selector
            ],
            out_specs=pl.BlockSpec((bt, Cout, npix), lambda i: (i, 0, 0)), # lane-dense output
            scratch_shapes=[pltpu.VMEM((4 * C, npix), jnp.bfloat16)],      # packed quadrants
        ),
        compiler_params=pltpu.CompilerParams(
            dimension_semantics=("parallel",),      # batch axis: shard across TCs
            vmem_limit_bytes=32 * 1024 * 1024,      # safe on v7x (64 MiB physical)
        ),
    )(x2, A, aux, sel)

    # Free contiguous reshape back to NCHW.
    return out_flat.reshape(B, Cout, Hh, Wh)


# ---------------------------- pure-JAX reference ----------------------------

def reference_forward(x, w_red, gamma, beta, eps=_EPS):
    """Literal translation of the PyTorch forward (GroupNorm(1, 4C) + 1x1 conv)."""
    B, C, H, W = x.shape
    x0 = x[:, :, 0::2, 0::2]
    x1 = x[:, :, 1::2, 0::2]
    x2 = x[:, :, 0::2, 1::2]
    x3 = x[:, :, 1::2, 1::2]
    xm = jnp.concatenate([x0, x1, x2, x3], axis=1)          # (B, 4C, H/2, W/2)
    mean = jnp.mean(xm, axis=(1, 2, 3), keepdims=True)
    var = jnp.mean(jnp.square(xm - mean), axis=(1, 2, 3), keepdims=True)
    xn = (xm - mean) * jax.lax.rsqrt(var + eps)
    xn = xn * gamma.reshape(1, -1, 1, 1) + beta.reshape(1, -1, 1, 1)
    return jnp.einsum('ok,bkhw->bohw', w_red, xn,
                      precision=jax.lax.Precision.HIGHEST)


# ----------------------------------- main ------------------------------------

if __name__ == "__main__":
    B, dim, H, W = 2, 4, 16, 16

    key = jax.random.PRNGKey(0)
    kx, kw, kg, kb = jax.random.split(key, 4)
    x = jax.random.normal(kx, (B, dim, H, W), jnp.float32)
    # nn.Conv2d(4*dim, 2*dim, 1, bias=False).weight squeezed to (2*dim, 4*dim)
    w_red = 0.2 * jax.random.normal(kw, (2 * dim, 4 * dim), jnp.float32)
    gamma = 1.0 + 0.1 * jax.random.normal(kg, (4 * dim,), jnp.float32)   # norm weight
    beta = 0.1 * jax.random.normal(kb, (4 * dim,), jnp.float32)          # norm bias

    out = jax.block_until_ready(patch_merging_forward(x, w_red, gamma, beta))
    assert out.shape == (B, 2 * dim, H // 2, W // 2)

    ref = jax.block_until_ready(reference_forward(x, w_red, gamma, beta))
    # Tolerance covers one bf16 rounding of the activations and of the folded weight on
    # the MXU paths (typical error ~1e-3); genuine layout/semantics bugs produce O(0.1-1)
    # errors, so this still catches them.
    np.testing.assert_allclose(np.asarray(out), np.asarray(ref), rtol=2e-2, atol=2e-2)

    print("KERNEL_OK")
</pallas_src>

<mosaic_0001>
module attributes {stable_mosaic.version = 11 : i64} {
  func.func @_patch_merging_kernel(%arg0: i32, %arg1: memref<1x4x8x32xf32, #tpu.memory_space<vmem>>, %arg2: memref<8x16xbf16, #tpu.memory_space<vmem>>, %arg3: memref<8x2xf32, #tpu.memory_space<vmem>>, %arg4: memref<32x32xbf16, #tpu.memory_space<vmem>>, %arg5: memref<1x8x64xf32, #tpu.memory_space<vmem>>, %arg6: memref<16x64xbf16, #tpu.memory_space<vmem>>) attributes {dimension_semantics = [#tpu.dimension_semantics<parallel>], iteration_bounds = array<i64: 2>, scalar_prefetch = 0 : i64, scratch_operands = 1 : i64, tpu.core_type = #tpu.core_type<tc>, window_params = [{transform_indices = @transform_0, window_bounds = array<i64: 1, 4, 8, 32>}, {pipeline_mode = #tpu.pipeline_mode<synchronous>, transform_indices = @transform_1, window_bounds = array<i64: 8, 16>}, {pipeline_mode = #tpu.pipeline_mode<synchronous>, transform_indices = @transform_2, window_bounds = array<i64: 8, 2>}, {pipeline_mode = #tpu.pipeline_mode<synchronous>, transform_indices = @transform_3, window_bounds = array<i64: 32, 32>}, {transform_indices = @transform_4, window_bounds = array<i64: 1, 8, 64>}]} {
    %c0 = arith.constant 0 : index
    %c0_0 = arith.constant 0 : index
    %0 = vector.load %arg2[%c0, %c0_0] : memref<8x16xbf16, #tpu.memory_space<vmem>>, vector<8x16xbf16>
    %c0_1 = arith.constant 0 : index
    %c0_2 = arith.constant 0 : index
    %1 = vector.load %arg4[%c0_1, %c0_2] : memref<32x32xbf16, #tpu.memory_space<vmem>>, vector<32x32xbf16>
    %c0_3 = arith.constant 0 : index
    %c0_4 = arith.constant 0 : index
    %2 = vector.load %arg3[%c0_3, %c0_4] : memref<8x2xf32, #tpu.memory_space<vmem>>, vector<8x1xf32>
    %c0_5 = arith.constant 0 : index
    %c1 = arith.constant 1 : index
    %3 = vector.load %arg3[%c0_5, %c1] : memref<8x2xf32, #tpu.memory_space<vmem>>, vector<8x1xf32>
    %c0_6 = arith.constant 0 : index
    %c0_7 = arith.constant 0 : index
    %c0_8 = arith.constant 0 : index
    %c0_9 = arith.constant 0 : index
    %4 = vector.load %arg1[%c0_6, %c0_7, %c0_8, %c0_9] : memref<1x4x8x32xf32, #tpu.memory_space<vmem>>, vector<1x4x8x32xf32>
    %5 = vector.shape_cast %4 : vector<1x4x8x32xf32> to vector<4x8x32xf32>
    %6 = vector.shape_cast %5 : vector<4x8x32xf32> to vector<1x4x8x32xf32>
    %cst = arith.constant dense<0.000000e+00> : vector<1xf32>
    %7 = vector.multi_reduction <add>, %6, %cst [1, 2, 3] : vector<1x4x8x32xf32> to vector<1xf32>
    %8 = vector.shape_cast %7 : vector<1xf32> to vector<1x1x1x1xf32>
    %9 = vector.extract %8[0, 0, 0, 0] : f32 from vector<1x1x1x1xf32>
    %cst_10 = arith.constant 9.765625E-4 : f32
    %10 = arith.mulf %9, %cst_10 : f32
    %11 = vector.broadcast %10 : f32 to vector<4x8x32xf32>
    %12 = arith.subf %5, %11 : vector<4x8x32xf32>
    %13 = arith.mulf %12, %12 : vector<4x8x32xf32>
    %14 = vector.shape_cast %13 : vector<4x8x32xf32> to vector<1x4x8x32xf32>
    %cst_11 = arith.constant dense<0.000000e+00> : vector<1xf32>
    %15 = vector.multi_reduction <add>, %14, %cst_11 [1, 2, 3] : vector<1x4x8x32xf32> to vector<1xf32>
    %16 = vector.shape_cast %15 : vector<1xf32> to vector<1x1x1x1xf32>
    %17 = vector.extract %16[0, 0, 0, 0] : f32 from vector<1x1x1x1xf32>
    %cst_12 = arith.constant 9.765625E-4 : f32
    %18 = arith.mulf %17, %cst_12 : f32
    %cst_13 = arith.constant 9.99999974E-6 : f32
    %19 = arith.addf %18, %cst_13 : f32
    %20 = math.rsqrt %19 : f32
    %21 = vector.shape_cast %5 : vector<4x8x32xf32> to vector<32x32xf32>
    %22 = arith.truncf %21 : vector<32x32xf32> to vector<32x32xbf16>
    %cst_14 = arith.constant dense<0.000000e+00> : vector<32x32xf32>
    %23 = tpu.matmul %22, %1, %cst_14 {dimension_numbers = #tpu.dot_dimension_numbers<[1], [0], [0], [1], [0, 0, 1, 1], [], []>} : vector<32x32xbf16>, vector<32x32xbf16>, vector<32x32xf32> -> vector<32x32xf32>
    %24 = vector.shape_cast %23 : vector<32x32xf32> to vector<4x8x32xf32>
    %25 = vector.extract_strided_slice %24 {offsets = [0, 0, 0], sizes = [4, 8, 8], strides = [1, 1, 1]} : vector<4x8x32xf32> to vector<4x8x8xf32>
    %26 = vector.shape_cast %25 : vector<4x8x8xf32> to vector<4x64xf32>
    %27 = arith.truncf %26 : vector<4x64xf32> to vector<4x64xbf16>
    %c0_15 = arith.constant 0 : index
    %c0_16 = arith.constant 0 : index
    %28 = vector.load %arg6[%c0_15, %c0_16] : memref<16x64xbf16, #tpu.memory_space<vmem>>, vector<4x64xbf16>
    tpu.vector_store %arg6[%c0_15, %c0_16], %27 {strides = array<i32>} : memref<16x64xbf16, #tpu.memory_space<vmem>>, vector<4x64xbf16>,
    %29 = vector.extract_strided_slice %24 {offsets = [0, 0, 8], sizes = [4, 8, 8], strides = [1, 1, 1]} : vector<4x8x32xf32> to vector<4x8x8xf32>
    %30 = vector.shape_cast %29 : vector<4x8x8xf32> to vector<4x64xf32>
    %31 = arith.truncf %30 : vector<4x64xf32> to vector<4x64xbf16>
    %c4 = arith.constant 4 : index
    %c0_17 = arith.constant 0 : index
    %32 = vector.load %arg6[%c4, %c0_17] : memref<16x64xbf16, #tpu.memory_space<vmem>>, vector<4x64xbf16>
    tpu.vector_store %arg6[%c4, %c0_17], %31 {strides = array<i32>} : memref<16x64xbf16, #tpu.memory_space<vmem>>, vector<4x64xbf16>,
    %33 = vector.extract_strided_slice %24 {offsets = [0, 0, 16], sizes = [4, 8, 8], strides = [1, 1, 1]} : vector<4x8x32xf32> to vector<4x8x8xf32>
    %34 = vector.shape_cast %33 : vector<4x8x8xf32> to vector<4x64xf32>
    %35 = arith.truncf %34 : vector<4x64xf32> to vector<4x64xbf16>
    %c8 = arith.constant 8 : index
    %c0_18 = arith.constant 0 : index
    %36 = vector.load %arg6[%c8, %c0_18] : memref<16x64xbf16, #tpu.memory_space<vmem>>, vector<4x64xbf16>
    tpu.vector_store %arg6[%c8, %c0_18], %35 {strides = array<i32>} : memref<16x64xbf16, #tpu.memory_space<vmem>>, vector<4x64xbf16>,
    %37 = vector.extract_strided_slice %24 {offsets = [0, 0, 24], sizes = [4, 8, 8], strides = [1, 1, 1]} : vector<4x8x32xf32> to vector<4x8x8xf32>
    %38 = vector.shape_cast %37 : vector<4x8x8xf32> to vector<4x64xf32>
    %39 = arith.truncf %38 : vector<4x64xf32> to vector<4x64xbf16>
    %c12 = arith.constant 12 : index
    %c0_19 = arith.constant 0 : index
    %40 = vector.load %arg6[%c12, %c0_19] : memref<16x64xbf16, #tpu.memory_space<vmem>>, vector<4x64xbf16>
    tpu.vector_store %arg6[%c12, %c0_19], %39 {strides = array<i32>} : memref<16x64xbf16, #tpu.memory_space<vmem>>, vector<4x64xbf16>,
    %c0_20 = arith.constant 0 : index
    %c0_21 = arith.constant 0 : index
    %41 = vector.load %arg6[%c0_20, %c0_21] : memref<16x64xbf16, #tpu.memory_space<vmem>>, vector<16x64xbf16>
    %cst_22 = arith.constant dense<0.000000e+00> : vector<8x64xf32>
    %42 = tpu.matmul %0, %41, %cst_22 {dimension_numbers = #tpu.dot_dimension_numbers<[1], [0], [0], [1], [0, 0, 1, 1], [], []>} : vector<8x16xbf16>, vector<16x64xbf16>, vector<8x64xf32> -> vector<8x64xf32>
    %43 = vector.broadcast %20 : f32 to vector<8x64xf32>
    %44 = arith.mulf %42, %43 : vector<8x64xf32>
    %45 = arith.mulf %10, %20 : f32
    %46 = vector.broadcast %45 : f32 to vector<8x1xf32>
    %47 = arith.mulf %46, %2 : vector<8x1xf32>
    %48 = arith.subf %3, %47 : vector<8x1xf32>
    %49 = vector.broadcast %48 : vector<8x1xf32> to vector<8x64xf32>
    %50 = arith.addf %44, %49 : vector<8x64xf32>
    %c0_23 = arith.constant 0 : index
    %c0_24 = arith.constant 0 : index
    %c0_25 = arith.constant 0 : index
    %51 = vector.load %arg5[%c0_23, %c0_24, %c0_25] : memref<1x8x64xf32, #tpu.memory_space<vmem>>, vector<1x8x64xf32>
    %52 = vector.shape_cast %51 : vector<1x8x64xf32> to vector<8x64xf32>
    %53 = vector.shape_cast %50 : vector<8x64xf32> to vector<1x8x64xf32>
    tpu.vector_store %arg5[%c0_23, %c0_24, %c0_25], %53 {strides = array<i32>} : memref<1x8x64xf32, #tpu.memory_space<vmem>>, vector<1x8x64xf32>,
    return
  }
  func.func @transform_0(%arg0: i32) -> (i32, i32, i32, i32) {
    %c0_i32 = arith.constant 0 : i32
    %c0_i32_0 = arith.constant 0 : i32
    %c0_i32_1 = arith.constant 0 : i32
    %c0_i32_2 = arith.constant 0 : i32
    return %arg0, %c0_i32, %c0_i32_0, %c0_i32_1 : i32, i32, i32, i32
  }
  func.func @transform_1(%arg0: i32) -> (i32, i32) {
    %c0_i32 = arith.constant 0 : i32
    %c0_i32_0 = arith.constant 0 : i32
    %c0_i32_1 = arith.constant 0 : i32
    return %c0_i32, %c0_i32_0 : i32, i32
  }
  func.func @transform_2(%arg0: i32) -> (i32, i32) {
    %c0_i32 = arith.constant 0 : i32
    %c0_i32_0 = arith.constant 0 : i32
    %c0_i32_1 = arith.constant 0 : i32
    return %c0_i32, %c0_i32_0 : i32, i32
  }
  func.func @transform_3(%arg0: i32) -> (i32, i32) {
    %c0_i32 = arith.constant 0 : i32
    %c0_i32_0 = arith.constant 0 : i32
    %c0_i32_1 = arith.constant 0 : i32
    return %c0_i32, %c0_i32_0 : i32, i32
  }
  func.func @transform_4(%arg0: i32) -> (i32, i32, i32) {
    %c0_i32 = arith.constant 0 : i32
    %c0_i32_0 = arith.constant 0 : i32
    %c0_i32_1 = arith.constant 0 : i32
    return %arg0, %c0_i32, %c0_i32_0 : i32, i32, i32
  }
}

</mosaic_0001>

<llo_original>
// kernel: tpu_custom_call.1
$region0: #{tpu_custom_call.1}
  #allocation0 [shape = 'u32[]', space=smem, size = 0x4, offset = 0x4, fixed_abs, tag = 'smem constant byte address 0x4 - core index']
  #allocation1 [shape = 'u32[144,128]{1,0:T(1,128)}', space=vmem, size = 0x12000, scoped, tag = 'internal scratch']
  #allocation2 [shape = 'bf16[16,64]{1,0:T(8,128)(2,1)}', space=vmem, size = 0x1000, scoped, tag = 'scratch operand']
  %s0 = inlined_call_operand.hbm [shape: f32[2,4,8,32], index: 0, kind: input, shape index: {}]
  %s1 = inlined_call_operand.vmem [shape: bf16[8,16], index: 1, kind: input, shape index: {}]
  %s2 = inlined_call_operand.vmem [shape: f32[8,2], index: 2, kind: input, shape index: {}]
  %s3 = inlined_call_operand.hbm [shape: bf16[32,32], index: 3, kind: input, shape index: {}]
  %s4 = inlined_call_operand.hbm [shape: f32[2,8,64], index: 4, kind: output, shape index: {}]
  %s5 = sld [smem:[#allocation0]]
  $region57: #{tpu_custom_call.1} parent=0
    _
  %s7 = ssub.s32 1, %s5
  %s8 = scalar_select 0, %s7, %s5
  $region1: #{tpu_custom_call.1} parent=0
    #allocation3 [shape = 'u8[32768]{0}', space=vmem, size = 0x8000, scoped, tag = 'input window, operand 0']
    #allocation4 [shape = 's32[2]{0}', space=sflag, size = 0x8, scoped, tag = 'scoped memory for tpu_custom_call.1']
    #allocation5 [shape = 's32[2]{0}', space=sflag, size = 0x8, scoped, tag = 'scoped memory for tpu_custom_call.1']
    #allocation6 [shape = 'u8[8192]{0}', space=vmem, size = 0x2000, scoped, tag = 'input window, operand 3, single buffered']
    #allocation7 [shape = 's32[1]{0}', space=sflag, size = 0x4, scoped, tag = 'scoped memory for tpu_custom_call.1']
    #allocation8 [shape = 'u8[8192]{0}', space=vmem, size = 0x2000, scoped, tag = 'output window, operand 0']
    %9 = vsyncpa [#allocation4], 0
    %s10 = scalar_lea.sflag [#allocation4], 1
    %11 = vsyncpa %s10, 0
    %12 = vsyncpa [#allocation7], 0
    %13 = vsyncpa [#allocation5], 0
    %s14 = scalar_lea.sflag [#allocation5], 1
    %15 = vsyncpa %s14, 0
    loop: start=0, step=1, limit=4
    $region2: #{tpu_custom_call.1} parent=1 // loop_pre_header
      _
    $region3: #{tpu_custom_call.1} parent=1 // loop_header
      %s17 = sphi 0, %s21
      %p18 = scmp.ge.s32.totalorder %s17, 4
      %s27 = sphi 0, %s29
      %s30 = sphi 0, %s27
      %s31 = sphi 0, %s30
      %s47 = sphi 0, %s31
      %s51 = sphi 0, %s51
      %s53 = sphi 0, %s51
      %s54 = sphi 0, %s53
      %s68 = sphi 0, %s54
      %s72 = sphi 0, %s72
      %s74 = sphi 0, %s72
      %s75 = sphi 0, %s74
      %s89 = sphi 0, %s75
      %s93 = sphi 0, %s93
      %s95 = sphi 0, %s93
      %s96 = sphi 0, %s95
      %s110 = sphi 0, %s96
      %s116 = sphi 0, %s118
      %s119 = sphi 0, %s116
      %s120 = sphi 0, %s119
      %s136 = sphi 0, %s120
    $region4: #{tpu_custom_call.1} parent=1 // loop_header_branch
      %20 = sbr.rel (%p18) target = $region8
    $region5: #{tpu_custom_call.1} parent=1 // loop_body
      %s22 = ssub.s32 %s17, 1
      %s23 = ssub.s32 %s17, 2
      %s24 = sadd.s32 %s17, 1
      %s25 = ssub.s32 %s17, %s24
      %p26 = scmp.eq.s32.totalorder %s25, 0
      %s28 = sadd.s32 %s27, 1
      %s29 = scalar_select %p26, %s27, %s28
      %p32 = pneg %p26
      %p33 = scmp.eq.s32.totalorder %s17, 1
      %p34 = por %p32, %p33
      %p35 = scmp.ne.s32.totalorder %s27, %s30
      %p36 = scmp.eq.s32.totalorder %s17, 0
      %p37 = por %p35, %p36
      %p38 = scmp.ne.s32.totalorder %s27, %s30
      %p39 = scmp.eq.s32.totalorder %s22, 1
      %p40 = por %p38, %p39
      %p41 = scmp.ne.s32.totalorder %s30, %s31
      %p42 = scmp.eq.s32.totalorder %s22, 0
      %p43 = por %p41, %p42
      %p44 = scmp.ne.s32.totalorder %s30, %s31
      %p45 = scmp.eq.s32.totalorder %s23, 1
      %p46 = por %p44, %p45
      %p48 = scmp.ne.s32.totalorder %s31, %s47
      %p49 = scmp.eq.s32.totalorder %s23, 0
      %p50 = por %p48, %p49
      %s52 = sadd.s32 %s51, 1
      %p55 = scmp.eq.s32.totalorder %s17, 1
      %p56 = scmp.ne.s32.totalorder %s51, %s53
      %p57 = scmp.eq.s32.totalorder %s17, 0
      %p58 = por %p56, %p57
      %p59 = scmp.ne.s32.totalorder %s51, %s53
      %p60 = scmp.eq.s32.totalorder %s22, 1
      %p61 = por %p59, %p60
      %p62 = scmp.ne.s32.totalorder %s53, %s54
      %p63 = scmp.eq.s32.totalorder %s22, 0
      %p64 = por %p62, %p63
      %p65 = scmp.ne.s32.totalorder %s53, %s54
      %p66 = scmp.eq.s32.totalorder %s23, 1
      %p67 = por %p65, %p66
      %p69 = scmp.ne.s32.totalorder %s54, %s68
      %p70 = scmp.eq.s32.totalorder %s23, 0
      %p71 = por %p69, %p70
      %s73 = sadd.s32 %s72, 1
      %p76 = scmp.eq.s32.totalorder %s17, 1
      %p77 = scmp.ne.s32.totalorder %s72, %s74
      %p78 = scmp.eq.s32.totalorder %s17, 0
      %p79 = por %p77, %p78
      %p80 = scmp.ne.s32.totalorder %s72, %s74
      %p81 = scmp.eq.s32.totalorder %s22, 1
      %p82 = por %p80, %p81
      %p83 = scmp.ne.s32.totalorder %s74, %s75
      %p84 = scmp.eq.s32.totalorder %s22, 0
      %p85 = por %p83, %p84
      %p86 = scmp.ne.s32.totalorder %s74, %s75
      %p87 = scmp.eq.s32.totalorder %s23, 1
      %p88 = por %p86, %p87
      %p90 = scmp.ne.s32.totalorder %s75, %s89
      %p91 = scmp.eq.s32.totalorder %s23, 0
      %p92 = por %p90, %p91
      %s94 = sadd.s32 %s93, 1
      %p97 = scmp.eq.s32.totalorder %s17, 1
      %p98 = scmp.ne.s32.totalorder %s93, %s95
      %p99 = scmp.eq.s32.totalorder %s17, 0
      %p100 = por %p98, %p99
      %p101 = scmp.ne.s32.totalorder %s93, %s95
      %p102 = scmp.eq.s32.totalorder %s22, 1
      %p103 = por %p101, %p102
      %p104 = scmp.ne.s32.totalorder %s95, %s96
      %p105 = scmp.eq.s32.totalorder %s22, 0
      %p106 = por %p104, %p105
      %p107 = scmp.ne.s32.totalorder %s95, %s96
      %p108 = scmp.eq.s32.totalorder %s23, 1
      %p109 = por %p107, %p108
      %p111 = scmp.ne.s32.totalorder %s96, %s110
      %p112 = scmp.eq.s32.totalorder %s23, 0
      %p113 = por %p111, %p112
      %s114 = ssub.s32 %s17, %s24
      %p115 = scmp.eq.s32.totalorder %s114, 0
      %s117 = sadd.s32 %s116, 1
      %s118 = scalar_select %p115, %s116, %s117
      %p121 = pneg %p115
      %p122 = scmp.eq.s32.totalorder %s17, 1
      %p123 = por %p121, %p122
      %p124 = scmp.ne.s32.totalorder %s116, %s119
      %p125 = scmp.eq.s32.totalorder %s17, 0
      %p126 = por %p124, %p125
      %p127 = scmp.ne.s32.totalorder %s116, %s119
      %p128 = scmp.eq.s32.totalorder %s22, 1
      %p129 = por %p127, %p128
      %p130 = scmp.ne.s32.totalorder %s119, %s120
      %p131 = scmp.eq.s32.totalorder %s22, 0
      %p132 = por %p130, %p131
      %p133 = scmp.ne.s32.totalorder %s119, %s120
      %p134 = scmp.eq.s32.totalorder %s23, 1
      %p135 = por %p133, %p134
      %p137 = scmp.ne.s32.totalorder %s120, %s136
      %p138 = scmp.eq.s32.totalorder %s23, 0
      %p139 = por %p137, %p138
      %p140 = scmp.le.s32.totalorder 1, %s17
      %p141 = scmp.lt.s32.totalorder %s17, 3
      %p142 = pnand %p140, %p141
      %p143 = pneg %p142
      // Predicated region
      $region9: #{tpu_custom_call.1} parent=5 // pred_check
        _
      $region10: #{tpu_custom_call.1} parent=5 // pred_check_branch
        %145 = sbr.rel (%p142) target = $region12
      $region11: #{tpu_custom_call.1} parent=5 // pred_region
        %s146 = ssub.s32 %s17, 1
        // Predicated region
        $region13: #{tpu_custom_call.1} parent=11 // pred_check
          %p147 = pneg %p64
        $region14: #{tpu_custom_call.1} parent=11 // pred_check_branch
          %149 = sbr.rel (%p147) target = $region16
        $region15: #{tpu_custom_call.1} parent=11 // pred_region
          _
        $region16: #{tpu_custom_call.1} parent=11 // pred_fallthru
          _
        // Predicated region
        $region17: #{tpu_custom_call.1} parent=11 // pred_check
          %p150 = pneg %p85
        $region18: #{tpu_custom_call.1} parent=11 // pred_check_branch
          %152 = sbr.rel (%p150) target = $region20
        $region19: #{tpu_custom_call.1} parent=11 // pred_region
          _
        $region20: #{tpu_custom_call.1} parent=11 // pred_fallthru
          _
        // Predicated region
        $region21: #{tpu_custom_call.1} parent=11 // pred_check
          %p153 = pneg %p106
        $region22: #{tpu_custom_call.1} parent=11 // pred_check_branch
          %155 = sbr.rel (%p153) target = $region24
        $region23: #{tpu_custom_call.1} parent=11 // pred_region
          %s157 = ssub.s32 256, 256
          %158 = vsyncadd [#allocation7], %s157
          %s159 = sshll.u32 [#allocation6], 4
          %s160 = int_to_ptr.vmem [resolvable:$true] %s159
          %165 = dma.hbm_to_vmem [thread:$0]  %s3, 256, %s160, [#allocation7], 64, 64, 4
        $region24: #{tpu_custom_call.1} parent=11 // pred_fallthru
          _
      $region12: #{tpu_custom_call.1} parent=5 // pred_fallthru
        _
      %p166 = scmp.lt.s32.totalorder %s17, 2
      // Predicated region
      $region25: #{tpu_custom_call.1} parent=5 // pred_check
        %p167 = pneg %p166
      $region26: #{tpu_custom_call.1} parent=5 // pred_check_branch
        %169 = sbr.rel (%p167) target = $region28
      $region27: #{tpu_custom_call.1} parent=5 // pred_region
        // Predicated region
        $region29: #{tpu_custom_call.1} parent=27 // pred_check
          %p170 = pneg %p37
        $region30: #{tpu_custom_call.1} parent=27 // pred_check_branch
          %172 = sbr.rel (%p170) target = $region32
        $region31: #{tpu_custom_call.1} parent=27 // pred_region
          %s173 = sand.u32 %s27, 1
          %s174 = scalar_lea.sflag [#allocation4], %s173
          %s175 = sand.u32 %s27, 1
          %s176 = smul.addr %s175, 32
          %s177 = scalar_lea.vmem [#allocation3], %s176
          %s179 = ssub.s32 512, 512
          %180 = vsyncadd %s174, %s179
          %s181 = smul.addr %s17, 4
          %s182 = smul.addr %s181, 128
          %s183 = scalar_lea.hbm %s0, %s182
          %s184 = sshll.u32 %s177, 4
          %s185 = int_to_ptr.vmem [resolvable:$true] %s184
          %190 = dma.hbm_to_vmem [thread:$0]  %s183, 512, %s185, %s174, 128, 128, 8
        $region32: #{tpu_custom_call.1} parent=27 // pred_fallthru
          _
      $region28: #{tpu_custom_call.1} parent=5 // pred_fallthru
        _
      %p191 = scmp.le.s32.totalorder 1, %s17
      %p192 = scmp.lt.s32.totalorder %s17, 3
      %p193 = pnand %p191, %p192
      %p194 = pneg %p193
      // Predicated region
      $region33: #{tpu_custom_call.1} parent=5 // pred_check
        _
      $region34: #{tpu_custom_call.1} parent=5 // pred_check_branch
        %196 = sbr.rel (%p193) target = $region36
      $region35: #{tpu_custom_call.1} parent=5 // pred_region
        %s197 = ssub.s32 %s17, 1
        %s198 = sand.u32 %s30, 1
        %s199 = scalar_lea.sflag [#allocation4], %s198
        %s200 = sand.u32 %s30, 1
        %s201 = smul.addr %s200, 32
        %s202 = scalar_lea.vmem [#allocation3], %s201
        // Predicated region
        $region37: #{tpu_custom_call.1} parent=35 // pred_check
          %p203 = pneg %p43
        $region38: #{tpu_custom_call.1} parent=35 // pred_check_branch
          %205 = sbr.rel (%p203) target = $region40
        $region39: #{tpu_custom_call.1} parent=35 // pred_region
          %206 = dma.done %s199, 512
        $region40: #{tpu_custom_call.1} parent=35 // pred_fallthru
          _
        // Predicated region
        $region41: #{tpu_custom_call.1} parent=35 // pred_check
          %p207 = pneg %p106
        $region42: #{tpu_custom_call.1} parent=35 // pred_check_branch
          %209 = sbr.rel (%p207) target = $region44
        $region43: #{tpu_custom_call.1} parent=35 // pred_region
          %210 = dma.done [#allocation7], 256
        $region44: #{tpu_custom_call.1} parent=35 // pred_fallthru
          _
        %s211 = sand.u32 %s30, 1
        %s212 = scalar_lea.sflag [#allocation4], %s211
        %s213 = sand.u32 %s30, 1
        %s214 = smul.addr %s213, 32
        %s215 = scalar_lea.vmem [#allocation3], %s214
        %p216 = pneg %p43
        %p217 = pneg %p40
        %p218 = pneg %p64
        %p219 = pneg %p61
        %p220 = pneg %p85
        %p221 = pneg %p82
        %p222 = pneg %p106
        %p223 = pneg %p103
        %p224 = pneg %p132
        %p225 = pneg %p129
        %s226 = sand.u32 %s119, 1
        %s227 = scalar_lea.sflag [#allocation5], %s226
        %s228 = sand.u32 %s119, 1
        %s229 = smul.addr %s228, 8
        %s230 = scalar_lea.vmem [#allocation8], %s229
        %v232 = vld [vmem:[%s1] sm:$0xf]
        %v233 = vld [vmem:[#allocation6] sm:$0xf]
        %v234 = vld [vmem:[#allocation6 + $0x4] sm:$0xf]
        %v235 = vld [vmem:[#allocation6 + $0x8] sm:$0xf]
        %v236 = vld [vmem:[#allocation6 + $0xc] sm:$0xf]
        %v237 = vld [vmem:[%s2] sm:$0xff]
        %v238 = vld [vmem:[%s202] sm:$0xff]
        %v239 = vld [vmem:[%s202 + $0x8] sm:$0xff]
        %v240 = vld [vmem:[%s202 + $0x10] sm:$0xff]
        %v241 = vld [vmem:[%s202 + $0x18] sm:$0xff]
        %vm242 = vcmask 261120
        %v243 = vsel %vm242, %v238, 0.0
        %v244 = vsel %vm242, %v239, 0.0
        %v245 = vadd.f32 %v243, %v244
        %v246 = vsel %vm242, %v240, 0.0
        %v247 = vadd.f32 %v245, %v246
        %v248 = vsel %vm242, %v241, 0.0
        %v249 = vadd.f32 %v247, %v248
        %250 = vadd.xlane.f32.xlu0 %v249
        %v251 = vpop.xlane.xlu0 %250
        %v252 = vrot.slane %v251, 4
        %v253 = vadd.f32 %v251, %v252
        %v254 = vrot.slane %v253, 2
        %v255 = vadd.f32 %v253, %v254
        %v256 = vrot.slane %v255, 1
        %v257 = vadd.f32 %v255, %v256
        %s258 = vtos %v257
        %s259 = smul.f32 %s258, 0.0009765625
        %v260 = vstv %s259
        %v261 = vsub.f32 %v238, %v260
        %v262 = vsub.f32 %v239, %v260
        %v263 = vsub.f32 %v240, %v260
        %v264 = vsub.f32 %v241, %v260
        %v265 = vmul.f32 %v261, %v261
        %v266 = vmul.f32 %v262, %v262
        %v267 = vmul.f32 %v263, %v263
        %v268 = vmul.f32 %v264, %v264
        %v269 = vsel %vm242, %v265, 0.0
        %v270 = vsel %vm242, %v266, 0.0
        %v271 = vadd.f32 %v269, %v270
        %v272 = vsel %vm242, %v267, 0.0
        %v273 = vadd.f32 %v271, %v272
        %v274 = vsel %vm242, %v268, 0.0
        %v275 = vadd.f32 %v273, %v274
        %276 = vadd.xlane.f32.xlu0 %v275
        %v277 = vpop.xlane.xlu0 %276
        %v278 = vrot.slane %v277, 4
        %v279 = vadd.f32 %v277, %v278
        %v280 = vrot.slane %v279, 2
        %v281 = vadd.f32 %v279, %v280
        %v282 = vrot.slane %v281, 1
        %v283 = vadd.f32 %v281, %v282
        %s284 = vtos %v283
        %s285 = smul.f32 %s284, 0.0009765625
        %s286 = sadd.f32 %s285, 1e-05
        %v287 = vstv %s286
        %v288 = vrsqrt.pop %v287
        %s289 = vtos %v288
        %v290 = vpack.c.bf16 %v239, %v238
        %v291 = vpack.c.bf16 %v241, %v240
        %v296 = vunpack.c.l.b16 %v233
        %v297 = vunpack.c.l.b16 %v234
        %v298 = vunpack.c.l.b16 %v235
        %v299 = vunpack.c.l.b16 %v236
        %v300 = vpack.c.b16 %v297, %v296
        %v301 = vpack.c.b16 %v299, %v298
        %v305 = vsel %vm242, %v290, 0
        %v308 = vsel %vm242, %v291, 0
        %310 = vmatprep.subr.bf16.mxu0 0
        %311 = vmatpush1.bf16.msra.mxu0 0
        %312 = vmatprep.subr.bf16.mxu0 0
        %313 = vmatpush1.bf16.msra.mxu0 0
        %314 = vmatprep.subr.bf16.mxu0 0
        %315 = vmatpush1.bf16.msra.mxu0 0
        %316 = vmatprep.subr.bf16.mxu0 0
        %317 = vmatpush1.bf16.msra.mxu0 0
        %318 = vmatprep.subr.bf16.mxu0 0
        %319 = vmatpush1.bf16.msra.mxu0 0
        %320 = vmatprep.subr.bf16.mxu0 0
        %321 = vmatpush1.bf16.msra.mxu0 0
        %322 = vmatprep.subr.bf16.mxu0 0
        %323 = vmatpush1.bf16.msra.mxu0 %v301
        %324 = vmatprep.subr.bf16.mxu0 0
        %325 = vmatpush1.bf16.msra.mxu0 %v300
        %326 = vmatprep.subr.bf16.mxu0 0
        %327 = vmatpush2.bf16.msra.mxu0 0
        %328 = vmatprep.subr.bf16.mxu0 0
        %329 = vmatpush2.bf16.msra.mxu0 0
        %330 = vmatprep.subr.bf16.mxu0 0
        %331 = vmatpush2.bf16.msra.mxu0 0
        %332 = vmatprep.subr.bf16.mxu0 0
        %333 = vmatpush2.bf16.msra.mxu0 0
        %334 = vmatprep.subr.bf16.mxu0 0
        %335 = vmatpush2.bf16.msra.mxu0 0
        %336 = vmatprep.subr.bf16.mxu0 0
        %337 = vmatpush2.bf16.msra.mxu0 0
        %338 = vmatprep.subr.bf16.mxu0 0
        %339 = vmatpush2.bf16.msra.mxu0 0
        %340 = vmatprep.subr.bf16.mxu0 0
        %341 = vmatpush2.bf16.msra.mxu0 0
        %342 = vmatprep.mubr.bf16.mxu0 0
        %343 = vmatmul.mubr.bf16.gmra.mxu0 %v305
        %v344 = vpop.f32.mrf.mxu0
        %v345 = vadd.f32 0.0, %v344
        %v346 = vpop.f32.mrf.mxu0
        %v347 = vpop.f32.mrf.mxu0
        %v348 = vadd.f32 0.0, %v347
        %v349 = vpop.f32.mrf.mxu0
        %350 = vmatprep.mubr.bf16.mxu0 0
        %351 = vmatmul.mubr.bf16.gmra.mxu0 %v308
        %v352 = vpop.f32.mrf.mxu0
        %v353 = vadd.f32 0.0, %v352
        %v354 = vpop.f32.mrf.mxu0
        %v355 = vpop.f32.mrf.mxu0
        %v356 = vadd.f32 0.0, %v355
        %v357 = vpop.f32.mrf.mxu0
        %358 = vdwg.mxu0
        %v359 = vcombine.low %v345, %v353
        %v360 = vcombine.high %v345, %v353
        %v362 = vunpack.c.l.s4 1983009808
        %v363 = vunpack.c.0.s8 %v362
        %v364 = vlaneseq
        %v365 = vshrl.u32 %v364, 7
        %v366 = vsub.s32 %v363, %v365
        %v367 = vrot.slane %v359, %v366
        %v369 = vunpack.c.l.s4 1983009808
        %v370 = vunpack.c.0.s8 %v369
        %v371 = vlaneseq
        %v372 = vshrl.u32 %v371, 7
        %v373 = vsub.s32 %v370, %v372
        %v374 = vrot.slane %v360, %v373
        %v375 = vcombine.low %v348, %v356
        %v376 = vcombine.high %v348, %v356
        %v378 = vunpack.c.l.s4 1983009808
        %v379 = vunpack.c.0.s8 %v378
        %v380 = vlaneseq
        %v381 = vshrl.u32 %v380, 7
        %v382 = vsub.s32 %v379, %v381
        %v383 = vrot.slane %v375, %v382
        %v385 = vunpack.c.l.s4 1983009808
        %v386 = vunpack.c.0.s8 %v385
        %v387 = vlaneseq
        %v388 = vshrl.u32 %v387, 7
        %v389 = vsub.s32 %v386, %v388
        %v390 = vrot.slane %v376, %v389
        %v391 = vcombine.low %v367, %v383
        %v392 = vcombine.high %v367, %v383
        %v394 = vunpack.c.l.s4 1934713408
        %v395 = vunpack.c.0.s8 %v394
        %v396 = vlaneseq
        %v397 = vshrl.u32 %v396, 7
        %v398 = vsub.s32 %v395, %v397
        %v399 = vrot.slane %v391, %v398
        %v401 = vunpack.c.l.s4 1934713408
        %v402 = vunpack.c.0.s8 %v401
        %v403 = vlaneseq
        %v404 = vshrl.u32 %v403, 7
        %v405 = vsub.s32 %v402, %v404
        %v406 = vrot.slane %v392, %v405
        %v407 = vcombine.low %v374, %v390
        %v408 = vcombine.high %v374, %v390
        %v410 = vunpack.c.l.s4 1934713408
        %v411 = vunpack.c.0.s8 %v410
        %v412 = vlaneseq
        %v413 = vshrl.u32 %v412, 7
        %v414 = vsub.s32 %v411, %v413
        %v415 = vrot.slane %v407, %v414
        %v417 = vunpack.c.l.s4 1934713408
        %v418 = vunpack.c.0.s8 %v417
        %v419 = vlaneseq
        %v420 = vshrl.u32 %v419, 7
        %v421 = vsub.s32 %v418, %v420
        %v422 = vrot.slane %v408, %v421
        %v423 = vcombine.high %v399, 0.0
        %v424 = vcombine.high %v406, 0.0
        %v425 = vcombine.high %v415, 0.0
        %v426 = vcombine.high %v422, 0.0
        %428 = vrot.lane.b32.xlu0 %v423, 8
        %v429 = vpop.permute.xlu0 %428
        %432 = vrot.lane.b32.xlu0 %v406, 16
        %v433 = vpop.permute.xlu0 %432
        %436 = vrot.lane.b32.xlu0 %v424, 24
        %v437 = vpop.permute.xlu0 %436
        %440 = vrot.lane.b32.xlu0 %v415, 32
        %v441 = vpop.permute.xlu0 %440
        %444 = vrot.lane.b32.xlu0 %v425, 40
        %v445 = vpop.permute.xlu0 %444
        %448 = vrot.lane.b32.xlu0 %v422, 48
        %v449 = vpop.permute.xlu0 %448
        %452 = vrot.lane.b32.xlu0 %v426, 56
        %v453 = vpop.permute.xlu0 %452
        %vm455 = vcmask 64512
        %v456 = vsel %vm455, %v399, %v429
        %vm457 = vcmask 130048
        %v458 = vsel %vm457, %v456, %v433
        %vm459 = vcmask 195584
        %v460 = vsel %vm459, %v458, %v437
        %v461 = vsel %vm242, %v460, %v441
        %vm462 = vcmask 326656
        %v463 = vsel %vm462, %v461, %v445
        %vm464 = vcmask 392192
        %v465 = vsel %vm464, %v463, %v449
        %vm466 = vcmask 457728
        %v467 = vsel %vm466, %v465, %v453
        %v468 = vpack.c.bf16 %v467, %v467
        %vm469 = vcmask 517120
        %470 = vst.msk [vmem:[#allocation2] sm:$0x3] %vm469, %v468
        %475 = vrot.lane.b32.xlu0 %v345, 120
        %v476 = vpop.permute.xlu0 %475
        %477 = vrot.lane.b32.xlu0 %v348, 120
        %v478 = vpop.permute.xlu0 %477
        %479 = vrot.lane.b32.xlu0 %v353, 120
        %v480 = vpop.permute.xlu0 %479
        %481 = vrot.lane.b32.xlu0 %v356, 120
        %v482 = vpop.permute.xlu0 %481
        %v487 = vcombine.low %v476, %v480
        %v488 = vcombine.high %v476, %v480
        %v490 = vunpack.c.l.s4 1983009808
        %v491 = vunpack.c.0.s8 %v490
        %v492 = vlaneseq
        %v493 = vshrl.u32 %v492, 7
        %v494 = vsub.s32 %v491, %v493
        %v495 = vrot.slane %v487, %v494
        %v497 = vunpack.c.l.s4 1983009808
        %v498 = vunpack.c.0.s8 %v497
        %v499 = vlaneseq
        %v500 = vshrl.u32 %v499, 7
        %v501 = vsub.s32 %v498, %v500
        %v502 = vrot.slane %v488, %v501
        %v503 = vcombine.low %v478, %v482
        %v504 = vcombine.high %v478, %v482
        %v506 = vunpack.c.l.s4 1983009808
        %v507 = vunpack.c.0.s8 %v506
        %v508 = vlaneseq
        %v509 = vshrl.u32 %v508, 7
        %v510 = vsub.s32 %v507, %v509
        %v511 = vrot.slane %v503, %v510
        %v513 = vunpack.c.l.s4 1983009808
        %v514 = vunpack.c.0.s8 %v513
        %v515 = vlaneseq
        %v516 = vshrl.u32 %v515, 7
        %v517 = vsub.s32 %v514, %v516
        %v518 = vrot.slane %v504, %v517
        %v519 = vcombine.low %v495, %v511
        %v520 = vcombine.high %v495, %v511
        %v522 = vunpack.c.l.s4 1934713408
        %v523 = vunpack.c.0.s8 %v522
        %v524 = vlaneseq
        %v525 = vshrl.u32 %v524, 7
        %v526 = vsub.s32 %v523, %v525
        %v527 = vrot.slane %v519, %v526
        %v529 = vunpack.c.l.s4 1934713408
        %v530 = vunpack.c.0.s8 %v529
        %v531 = vlaneseq
        %v532 = vshrl.u32 %v531, 7
        %v533 = vsub.s32 %v530, %v532
        %v534 = vrot.slane %v520, %v533
        %v535 = vcombine.low %v502, %v518
        %v536 = vcombine.high %v502, %v518
        %v538 = vunpack.c.l.s4 1934713408
        %v539 = vunpack.c.0.s8 %v538
        %v540 = vlaneseq
        %v541 = vshrl.u32 %v540, 7
        %v542 = vsub.s32 %v539, %v541
        %v543 = vrot.slane %v535, %v542
        %v545 = vunpack.c.l.s4 1934713408
        %v546 = vunpack.c.0.s8 %v545
        %v547 = vlaneseq
        %v548 = vshrl.u32 %v547, 7
        %v549 = vsub.s32 %v546, %v548
        %v550 = vrot.slane %v536, %v549
        %v551 = vcombine.high %v527, 0.0
        %v552 = vcombine.high %v534, 0.0
        %v553 = vcombine.high %v543, 0.0
        %v554 = vcombine.high %v550, 0.0
        %556 = vrot.lane.b32.xlu0 %v551, 8
        %v557 = vpop.permute.xlu0 %556
        %560 = vrot.lane.b32.xlu0 %v534, 16
        %v561 = vpop.permute.xlu0 %560
        %564 = vrot.lane.b32.xlu0 %v552, 24
        %v565 = vpop.permute.xlu0 %564
        %568 = vrot.lane.b32.xlu0 %v543, 32
        %v569 = vpop.permute.xlu0 %568
        %572 = vrot.lane.b32.xlu0 %v553, 40
        %v573 = vpop.permute.xlu0 %572
        %576 = vrot.lane.b32.xlu0 %v550, 48
        %v577 = vpop.permute.xlu0 %576
        %580 = vrot.lane.b32.xlu0 %v554, 56
        %v581 = vpop.permute.xlu0 %580
        %v583 = vsel %vm455, %v527, %v557
        %v584 = vsel %vm457, %v583, %v561
        %v585 = vsel %vm459, %v584, %v565
        %v586 = vsel %vm242, %v585, %v569
        %v587 = vsel %vm462, %v586, %v573
        %v588 = vsel %vm464, %v587, %v577
        %v589 = vsel %vm466, %v588, %v581
        %v590 = vpack.c.bf16 %v589, %v589
        %v592 = vunpack.c.l.b16 %v590
        %v593 = vpack.c.b16 %v592, %v592
        %v594 = vrot.slane %v593, 6
        %vm596 = vcmask 519170
        %597 = vst.msk [vmem:[#allocation2] sm:$0xc] %vm596, %v594
        %598 = vrot.lane.b32.xlu0 %v345, 112
        %v599 = vpop.permute.xlu0 %598
        %600 = vrot.lane.b32.xlu0 %v348, 112
        %v601 = vpop.permute.xlu0 %600
        %602 = vrot.lane.b32.xlu0 %v353, 112
        %v603 = vpop.permute.xlu0 %602
        %604 = vrot.lane.b32.xlu0 %v356, 112
        %v605 = vpop.permute.xlu0 %604
        %v610 = vcombine.low %v599, %v603
        %v611 = vcombine.high %v599, %v603
        %v613 = vunpack.c.l.s4 1983009808
        %v614 = vunpack.c.0.s8 %v613
        %v615 = vlaneseq
        %v616 = vshrl.u32 %v615, 7
        %v617 = vsub.s32 %v614, %v616
        %v618 = vrot.slane %v610, %v617
        %v620 = vunpack.c.l.s4 1983009808
        %v621 = vunpack.c.0.s8 %v620
        %v622 = vlaneseq
        %v623 = vshrl.u32 %v622, 7
        %v624 = vsub.s32 %v621, %v623
        %v625 = vrot.slane %v611, %v624
        %v626 = vcombine.low %v601, %v605
        %v627 = vcombine.high %v601, %v605
        %v629 = vunpack.c.l.s4 1983009808
        %v630 = vunpack.c.0.s8 %v629
        %v631 = vlaneseq
        %v632 = vshrl.u32 %v631, 7
        %v633 = vsub.s32 %v630, %v632
        %v634 = vrot.slane %v626, %v633
        %v636 = vunpack.c.l.s4 1983009808
        %v637 = vunpack.c.0.s8 %v636
        %v638 = vlaneseq
        %v639 = vshrl.u32 %v638, 7
        %v640 = vsub.s32 %v637, %v639
        %v641 = vrot.slane %v627, %v640
        %v642 = vcombine.low %v618, %v634
        %v643 = vcombine.high %v618, %v634
        %v645 = vunpack.c.l.s4 1934713408
        %v646 = vunpack.c.0.s8 %v645
        %v647 = vlaneseq
        %v648 = vshrl.u32 %v647, 7
        %v649 = vsub.s32 %v646, %v648
        %v650 = vrot.slane %v642, %v649
        %v652 = vunpack.c.l.s4 1934713408
        %v653 = vunpack.c.0.s8 %v652
        %v654 = vlaneseq
        %v655 = vshrl.u32 %v654, 7
        %v656 = vsub.s32 %v653, %v655
        %v657 = vrot.slane %v643, %v656
        %v658 = vcombine.low %v625, %v641
        %v659 = vcombine.high %v625, %v641
        %v661 = vunpack.c.l.s4 1934713408
        %v662 = vunpack.c.0.s8 %v661
        %v663 = vlaneseq
        %v664 = vshrl.u32 %v663, 7
        %v665 = vsub.s32 %v662, %v664
        %v666 = vrot.slane %v658, %v665
        %v668 = vunpack.c.l.s4 1934713408
        %v669 = vunpack.c.0.s8 %v668
        %v670 = vlaneseq
        %v671 = vshrl.u32 %v670, 7
        %v672 = vsub.s32 %v669, %v671
        %v673 = vrot.slane %v659, %v672
        %v674 = vcombine.high %v650, 0.0
        %v675 = vcombine.high %v657, 0.0
        %v676 = vcombine.high %v666, 0.0
        %v677 = vcombine.high %v673, 0.0
        %679 = vrot.lane.b32.xlu0 %v674, 8
        %v680 = vpop.permute.xlu0 %679
        %683 = vrot.lane.b32.xlu0 %v657, 16
        %v684 = vpop.permute.xlu0 %683
        %687 = vrot.lane.b32.xlu0 %v675, 24
        %v688 = vpop.permute.xlu0 %687
        %691 = vrot.lane.b32.xlu0 %v666, 32
        %v692 = vpop.permute.xlu0 %691
        %695 = vrot.lane.b32.xlu0 %v676, 40
        %v696 = vpop.permute.xlu0 %695
        %699 = vrot.lane.b32.xlu0 %v673, 48
        %v700 = vpop.permute.xlu0 %699
        %703 = vrot.lane.b32.xlu0 %v677, 56
        %v704 = vpop.permute.xlu0 %703
        %v706 = vsel %vm455, %v650, %v680
        %v707 = vsel %vm457, %v706, %v684
        %v708 = vsel %vm459, %v707, %v688
        %v709 = vsel %vm242, %v708, %v692
        %v710 = vsel %vm462, %v709, %v696
        %v711 = vsel %vm464, %v710, %v700
        %v712 = vsel %vm466, %v711, %v704
        %v713 = vpack.c.bf16 %v712, %v712
        %714 = vst.msk [vmem:[#allocation2 + $0x4] sm:$0x3] %vm469, %v713
        %715 = vrot.lane.b32.xlu0 %v345, 104
        %v716 = vpop.permute.xlu0 %715
        %717 = vrot.lane.b32.xlu0 %v348, 104
        %v718 = vpop.permute.xlu0 %717
        %719 = vrot.lane.b32.xlu0 %v353, 104
        %v720 = vpop.permute.xlu0 %719
        %721 = vrot.lane.b32.xlu0 %v356, 104
        %v722 = vpop.permute.xlu0 %721
        %v727 = vcombine.low %v716, %v720
        %v728 = vcombine.high %v716, %v720
        %v730 = vunpack.c.l.s4 1983009808
        %v731 = vunpack.c.0.s8 %v730
        %v732 = vlaneseq
        %v733 = vshrl.u32 %v732, 7
        %v734 = vsub.s32 %v731, %v733
        %v735 = vrot.slane %v727, %v734
        %v737 = vunpack.c.l.s4 1983009808
        %v738 = vunpack.c.0.s8 %v737
        %v739 = vlaneseq
        %v740 = vshrl.u32 %v739, 7
        %v741 = vsub.s32 %v738, %v740
        %v742 = vrot.slane %v728, %v741
        %v743 = vcombine.low %v718, %v722
        %v744 = vcombine.high %v718, %v722
        %v746 = vunpack.c.l.s4 1983009808
        %v747 = vunpack.c.0.s8 %v746
        %v748 = vlaneseq
        %v749 = vshrl.u32 %v748, 7
        %v750 = vsub.s32 %v747, %v749
        %v751 = vrot.slane %v743, %v750
        %v753 = vunpack.c.l.s4 1983009808
        %v754 = vunpack.c.0.s8 %v753
        %v755 = vlaneseq
        %v756 = vshrl.u32 %v755, 7
        %v757 = vsub.s32 %v754, %v756
        %v758 = vrot.slane %v744, %v757
        %v759 = vcombine.low %v735, %v751
        %v760 = vcombine.high %v735, %v751
        %v762 = vunpack.c.l.s4 1934713408
        %v763 = vunpack.c.0.s8 %v762
        %v764 = vlaneseq
        %v765 = vshrl.u32 %v764, 7
        %v766 = vsub.s32 %v763, %v765
        %v767 = vrot.slane %v759, %v766
        %v769 = vunpack.c.l.s4 1934713408
        %v770 = vunpack.c.0.s8 %v769
        %v771 = vlaneseq
        %v772 = vshrl.u32 %v771, 7
        %v773 = vsub.s32 %v770, %v772
        %v774 = vrot.slane %v760, %v773
        %v775 = vcombine.low %v742, %v758
        %v776 = vcombine.high %v742, %v758
        %v778 = vunpack.c.l.s4 1934713408
        %v779 = vunpack.c.0.s8 %v778
        %v780 = vlaneseq
        %v781 = vshrl.u32 %v780, 7
        %v782 = vsub.s32 %v779, %v781
        %v783 = vrot.slane %v775, %v782
        %v785 = vunpack.c.l.s4 1934713408
        %v786 = vunpack.c.0.s8 %v785
        %v787 = vlaneseq
        %v788 = vshrl.u32 %v787, 7
        %v789 = vsub.s32 %v786, %v788
        %v790 = vrot.slane %v776, %v789
        %v791 = vcombine.high %v767, 0.0
        %v792 = vcombine.high %v774, 0.0
        %v793 = vcombine.high %v783, 0.0
        %v794 = vcombine.high %v790, 0.0
        %796 = vrot.lane.b32.xlu0 %v791, 8
        %v797 = vpop.permute.xlu0 %796
        %800 = vrot.lane.b32.xlu0 %v774, 16
        %v801 = vpop.permute.xlu0 %800
        %804 = vrot.lane.b32.xlu0 %v792, 24
        %v805 = vpop.permute.xlu0 %804
        %808 = vrot.lane.b32.xlu0 %v783, 32
        %v809 = vpop.permute.xlu0 %808
        %812 = vrot.lane.b32.xlu0 %v793, 40
        %v813 = vpop.permute.xlu0 %812
        %816 = vrot.lane.b32.xlu0 %v790, 48
        %v817 = vpop.permute.xlu0 %816
        %820 = vrot.lane.b32.xlu0 %v794, 56
        %v821 = vpop.permute.xlu0 %820
        %v823 = vsel %vm455, %v767, %v797
        %v824 = vsel %vm457, %v823, %v801
        %v825 = vsel %vm459, %v824, %v805
        %v826 = vsel %vm242, %v825, %v809
        %v827 = vsel %vm462, %v826, %v813
        %v828 = vsel %vm464, %v827, %v817
        %v829 = vsel %vm466, %v828, %v821
        %v830 = vpack.c.bf16 %v829, %v829
        %v832 = vunpack.c.l.b16 %v830
        %v833 = vpack.c.b16 %v832, %v832
        %v834 = vrot.slane %v833, 6
        %836 = vst.msk [vmem:[#allocation2 + $0x4] sm:$0xc] %vm596, %v834
        %v837 = vld [vmem:[#allocation2] sm:$0xf]
        %v838 = vld [vmem:[#allocation2 + $0x4] sm:$0xf]
        %v841 = vunpack.c.l.b16 %v837
        %v842 = vunpack.c.l.b16 %v838
        %v843 = vpack.c.b16 %v842, %v841
        %v846 = vsel %vm457, %v232, 0
        %848 = vmatprep.subr.bf16.mxu0 0
        %849 = vmatpush1.bf16.msra.mxu0 0
        %850 = vmatprep.subr.bf16.mxu0 0
        %851 = vmatpush1.bf16.msra.mxu0 0
        %852 = vmatprep.subr.bf16.mxu0 0
        %853 = vmatpush1.bf16.msra.mxu0 0
        %854 = vmatprep.subr.bf16.mxu0 0
        %855 = vmatpush1.bf16.msra.mxu0 0
        %856 = vmatprep.subr.bf16.mxu0 0
        %857 = vmatpush1.bf16.msra.mxu0 0
        %858 = vmatprep.subr.bf16.mxu0 0
        %859 = vmatpush1.bf16.msra.mxu0 0
        %860 = vmatprep.subr.bf16.mxu0 0
        %861 = vmatpush1.bf16.msra.mxu0 0
        %862 = vmatprep.subr.bf16.mxu0 0
        %863 = vmatpush1.bf16.msra.mxu0 %v843
        %864 = vmatprep.subr.bf16.mxu0 0
        %865 = vmatpush2.bf16.msra.mxu0 0
        %866 = vmatprep.subr.bf16.mxu0 0
        %867 = vmatpush2.bf16.msra.mxu0 0
        %868 = vmatprep.subr.bf16.mxu0 0
        %869 = vmatpush2.bf16.msra.mxu0 0
        %870 = vmatprep.subr.bf16.mxu0 0
        %871 = vmatpush2.bf16.msra.mxu0 0
        %872 = vmatprep.subr.bf16.mxu0 0
        %873 = vmatpush2.bf16.msra.mxu0 0
        %874 = vmatprep.subr.bf16.mxu0 0
        %875 = vmatpush2.bf16.msra.mxu0 0
        %876 = vmatprep.subr.bf16.mxu0 0
        %877 = vmatpush2.bf16.msra.mxu0 0
        %878 = vmatprep.subr.bf16.mxu0 0
        %879 = vmatpush2.bf16.msra.mxu0 0
        %880 = vmatprep.mubr.bf16.mxu0 0
        %881 = vmatmul.mubr.bf16.gmra.mxu0 %v846
        %v882 = vpop.f32.mrf.mxu0
        %v883 = vadd.f32 0.0, %v882
        %v884 = vpop.f32.mrf.mxu0
        %v885 = vpop.f32.mrf.mxu0
        %v886 = vpop.f32.mrf.mxu0
        %887 = vdwg.mxu0
        %v888 = vstv %s289
        %v889 = vmul.f32 %v883, %v888
        %s890 = smul.f32 %s259, %s289
        %v891 = vstv %s890
        %v892 = vmul.f32 %v891, %v237
        %894 = vrot.lane.b32.xlu0 %v892, 1
        %v895 = vpop.permute.xlu0 %894
        %v897 = vsub.f32 %v237, %v895
        %899 = vset.pattern.permute.xlu0 1
        %900 = vperm.xlu0 %899, %v897
        %v901 = vpop.permute.xlu0 %900
        %v903 = vadd.f32 %v889, %v901
        %vm904 = vcmask 523264
        %905 = vst.msk [vmem:[%s230] sm:$0xff] %vm904, %v903
        %s906 = sand.u32 %s119, 1
        %s907 = scalar_lea.sflag [#allocation5], %s906
        %s908 = sand.u32 %s119, 1
        %s909 = smul.addr %s908, 8
        %s910 = scalar_lea.vmem [#allocation8], %s909
        // Predicated region
        $region45: #{tpu_custom_call.1} parent=35 // pred_check
          %p911 = pneg %p129
        $region46: #{tpu_custom_call.1} parent=35 // pred_check_branch
          %913 = sbr.rel (%p911) target = $region48
        $region47: #{tpu_custom_call.1} parent=35 // pred_region
          %s915 = ssub.s32 128, 128
          %916 = vsyncadd %s907, %s915
          %s917 = smul.addr %s22, 128
          %s918 = scalar_lea.hbm %s4, %s917
          %s920 = sshll.u32 %s910, 4
          %s921 = int_to_ptr.vmem [resolvable:$true] %s920
          %923 = dma.vmem_to_hbm [thread:$0]  %s921, 128, %s918, %s907
        $region48: #{tpu_custom_call.1} parent=35 // pred_fallthru
          _
      $region36: #{tpu_custom_call.1} parent=5 // pred_fallthru
        _
      %p924 = scmp.le.s32.totalorder 2, %s17
      // Predicated region
      $region49: #{tpu_custom_call.1} parent=5 // pred_check
        %p925 = pneg %p924
      $region50: #{tpu_custom_call.1} parent=5 // pred_check_branch
        %927 = sbr.rel (%p925) target = $region52
      $region51: #{tpu_custom_call.1} parent=5 // pred_region
        %s928 = ssub.s32 %s17, 2
        // Predicated region
        $region53: #{tpu_custom_call.1} parent=51 // pred_check
          %p929 = pneg %p135
        $region54: #{tpu_custom_call.1} parent=51 // pred_check_branch
          %931 = sbr.rel (%p929) target = $region56
        $region55: #{tpu_custom_call.1} parent=51 // pred_region
          %s932 = sand.u32 %s120, 1
          %s933 = scalar_lea.sflag [#allocation5], %s932
          %s934 = sand.u32 %s120, 1
          %s935 = smul.addr %s934, 8
          %s936 = scalar_lea.vmem [#allocation8], %s935
          %937 = dma.done %s933, 128
        $region56: #{tpu_custom_call.1} parent=51 // pred_fallthru
          _
      $region52: #{tpu_custom_call.1} parent=5 // pred_fallthru
        _
    $region6: #{tpu_custom_call.1} parent=1 // loop_footer
      %s21 = sadd.s32 1, %s17
    $region7: #{tpu_custom_call.1} parent=1 // loop_footer_branch
      %16 = sbr.rel target = $region3
    $region8: #{tpu_custom_call.1} parent=1 // loop_exit
      _
    %938 = vsyncpa [#allocation4], 1
    %s939 = scalar_lea.sflag [#allocation4], 1
    %940 = vsyncpa %s939, 1
    %941 = vsyncpa [#allocation7], 1
    %942 = vsyncpa [#allocation5], 1
    %s943 = scalar_lea.sflag [#allocation5], 1
    %944 = vsyncpa %s943, 1

</llo_original>
